<compile_context>
chip_gen: v7x
topology: tpu7x:2x2x1
jax: 0.10.0
libtpu: 0.0.40
codegen_flags: <defaults>
</compile_context>

<pallas_src>
import functools

import jax
import jax.numpy as jnp
from jax.experimental import pallas as pl
from jax.experimental.pallas import tpu as pltpu

_ROW_ALIGN = 16  # bf16 sublane packing: keep batch tiles 16-row aligned


def _round_up(x: int, m: int) -> int:
    return ((x + m - 1) // m) * m


def mlp_kernel(x_ref, w1_ref, b1_ref, w2_ref, b2_ref, o_ref):
    # fc1: bf16 x bf16 on the MXU, f32 accumulate.  x arrives bf16 -> no cast here.
    h = jnp.dot(x_ref[...], w1_ref[...], preferred_element_type=jnp.float32)
    h = jnp.maximum(h + b1_ref[...], 0.0)                      # f32 bias + ReLU
    # fc2: bf16 x bf16, f32 accumulate.  Class axis (10) intentionally unpadded.
    logits = jnp.dot(h.astype(jnp.bfloat16), w2_ref[...],
                     preferred_element_type=jnp.float32) + b2_ref[...]
    # log_softmax over the class axis, f32 (rows are independent; padded tail rows
    # are never written back).
    m = jnp.max(logits, axis=-1, keepdims=True)
    shifted = logits - m
    lse = jnp.log(jnp.sum(jnp.exp(shifted), axis=-1, keepdims=True))
    o_ref[...] = (shifted - lse).astype(o_ref.dtype)


def prepare_params(w1, b1, w2, b2):
    """One-time param prep: pad hidden dim 100->128 (lane-dense) and cast matmul
    weights to bf16.  Biases stay f32.  Zero padding contributes exactly zero
    through ReLU and fc2, so results are unchanged."""
    hidden = w1.shape[1]
    hidden_p = _round_up(hidden, 128)
    pad = hidden_p - hidden
    w1p = jnp.pad(w1.astype(jnp.float32), ((0, 0), (0, pad))).astype(jnp.bfloat16)
    b1p = jnp.pad(b1.astype(jnp.float32), (0, pad)).reshape(1, hidden_p)
    w2p = jnp.pad(w2.astype(jnp.float32), ((0, pad), (0, 0))).astype(jnp.bfloat16)
    b2p = b2.astype(jnp.float32).reshape(1, -1)
    return w1p, b1p, w2p, b2p


def default_tile_and_vmem():
    """Generation-gated sizing: 128 MiB-VMEM parts (v5e/v6e) use a bigger batch
    tile + limit; 64 MiB parts (v7x) stay at tb<=4096 / 48 MiB."""
    vmem_cap = 64 * 1024 * 1024
    try:
        info = pltpu.get_tpu_info()
        vmem_cap = int(getattr(info, "vmem_capacity_bytes", vmem_cap))
    except Exception:
        pass
    if vmem_cap >= 96 * 1024 * 1024:
        return 8192, 96 * 1024 * 1024
    return 4096, 48 * 1024 * 1024


@functools.partial(jax.jit, static_argnames=("tb_max", "vmem_limit_bytes"))
def net_forward(x, w1p, b1p, w2p, b2p, *, tb_max=4096,
                vmem_limit_bytes=48 * 1024 * 1024):
    """x: (B, 1, 28, 28) (anything flattening row-major to (B, 784)), f32 or bf16.
    Returns (B, num_classes) f32 log-probabilities."""
    B = x.shape[0]
    in_dim = w1p.shape[0]          # 784
    hidden_p = w1p.shape[1]        # 128
    num_classes = w2p.shape[1]
    # bf16 end-to-end x path: the kernel's dominant DMA stream is half-width.
    x2d = x.reshape(B, in_dim).astype(jnp.bfloat16)

    # Batch tile: largest 16-row-aligned tile up to tb_max, but guarantee at least
    # two grid steps when B allows it so the "parallel" axis shards across both
    # v7x TensorCores (v5e/v6e single-TC behavior is unchanged).
    tb = min(tb_max, _round_up(B, _ROW_ALIGN))
    if B > _ROW_ALIGN:
        tb = min(tb, _round_up(-(-B // 2), _ROW_ALIGN))
    grid = (pl.cdiv(B, tb),)

    const2d = lambda i: (0, 0)     # weights/biases: same block every step -> resident
    resident = pl.Buffered(1)      # constant index_map -> single buffer, no 2nd copy
    return pl.pallas_call(
        mlp_kernel,
        out_shape=jax.ShapeDtypeStruct((B, num_classes), jnp.float32),
        grid=grid,
        in_specs=[
            pl.BlockSpec((tb, in_dim), lambda i: (i, 0)),
            pl.BlockSpec((in_dim, hidden_p), const2d, pipeline_mode=resident),
            pl.BlockSpec((1, hidden_p), const2d, pipeline_mode=resident),
            pl.BlockSpec((hidden_p, num_classes), const2d, pipeline_mode=resident),
            pl.BlockSpec((1, num_classes), const2d, pipeline_mode=resident),
        ],
        out_specs=pl.BlockSpec((tb, num_classes), lambda i: (i, 0)),
        compiler_params=pltpu.CompilerParams(
            dimension_semantics=("parallel",),
            vmem_limit_bytes=vmem_limit_bytes,
        ),
    )(x2d, w1p, b1p, w2p, b2p)


def _init_params(key, num_classes=10):
    # Deterministic init mimicking nn.Linear's uniform(-1/sqrt(fan_in), 1/sqrt(fan_in)),
    # stored as (in_features, out_features) so the kernel computes y = x @ W + b.
    k1, k2, k3, k4 = jax.random.split(key, 4)
    bound1 = 1.0 / jnp.sqrt(784.0)
    bound2 = 1.0 / jnp.sqrt(100.0)
    w1 = jax.random.uniform(k1, (784, 100), jnp.float32, -bound1, bound1)
    b1 = jax.random.uniform(k2, (100,), jnp.float32, -bound1, bound1)
    w2 = jax.random.uniform(k3, (100, num_classes), jnp.float32, -bound2, bound2)
    b2 = jax.random.uniform(k4, (num_classes,), jnp.float32, -bound2, bound2)
    return w1, b1, w2, b2


if __name__ == "__main__":
    key = jax.random.PRNGKey(0)
    kx, kp = jax.random.split(key)
    B, num_classes = 2, 10
    x = jax.random.normal(kx, (B, 1, 28, 28), jnp.float32)
    w1, b1, w2, b2 = _init_params(kp, num_classes)
    params = prepare_params(w1, b1, w2, b2)     # one-time pad + bf16 cast

    tb_max, vmem_limit = default_tile_and_vmem()
    out = net_forward(x, *params, tb_max=tb_max, vmem_limit_bytes=vmem_limit)
    out = jax.block_until_ready(out)

    # Pure-JAX reference using the same mixed-precision path (bf16 MXU inputs,
    # f32 accumulation, f32 epilogue).
    x2d = x.reshape(B, 784).astype(jnp.bfloat16)
    h_ref = jnp.maximum(
        jnp.dot(x2d, w1.astype(jnp.bfloat16),
                preferred_element_type=jnp.float32) + b1, 0.0)
    logits_ref = jnp.dot(h_ref.astype(jnp.bfloat16), w2.astype(jnp.bfloat16),
                         preferred_element_type=jnp.float32) + b2
    ref = jax.nn.log_softmax(logits_ref, axis=1)

    assert out.shape == (B, num_classes)
    max_err = float(jnp.max(jnp.abs(out - ref)))
    assert jnp.allclose(out, ref, atol=1e-4, rtol=1e-3), f"max_err={max_err}"

    print("KERNEL_OK")
</pallas_src>

<mosaic_0001>
module attributes {stable_mosaic.version = 11 : i64} {
  func.func @mlp_kernel(%arg0: i32, %arg1: memref<16x784xbf16, #tpu.memory_space<vmem>>, %arg2: memref<784x128xbf16, #tpu.memory_space<vmem>>, %arg3: memref<1x128xf32, #tpu.memory_space<vmem>>, %arg4: memref<128x10xbf16, #tpu.memory_space<vmem>>, %arg5: memref<1x10xf32, #tpu.memory_space<vmem>>, %arg6: memref<16x10xf32, #tpu.memory_space<vmem>>) attributes {dimension_semantics = [#tpu.dimension_semantics<parallel>], iteration_bounds = array<i64: 1>, scalar_prefetch = 0 : i64, scratch_operands = 0 : i64, tpu.core_type = #tpu.core_type<tc>, window_params = [{transform_indices = @transform_0, window_bounds = array<i64: 16, 784>}, {pipeline_mode = #tpu.pipeline_mode<synchronous>, transform_indices = @transform_1, window_bounds = array<i64: 784, 128>}, {pipeline_mode = #tpu.pipeline_mode<synchronous>, transform_indices = @transform_2, window_bounds = array<i64: 1, 128>}, {pipeline_mode = #tpu.pipeline_mode<synchronous>, transform_indices = @transform_3, window_bounds = array<i64: 128, 10>}, {pipeline_mode = #tpu.pipeline_mode<synchronous>, transform_indices = @transform_4, window_bounds = array<i64: 1, 10>}, {transform_indices = @transform_5, window_bounds = array<i64: 16, 10>}]} {
    %c0 = arith.constant 0 : index
    %c0_0 = arith.constant 0 : index
    %0 = vector.load %arg1[%c0, %c0_0] : memref<16x784xbf16, #tpu.memory_space<vmem>>, vector<16x784xbf16>
    %c0_1 = arith.constant 0 : index
    %c0_2 = arith.constant 0 : index
    %1 = vector.load %arg2[%c0_1, %c0_2] : memref<784x128xbf16, #tpu.memory_space<vmem>>, vector<784x128xbf16>
    %cst = arith.constant dense<0.000000e+00> : vector<16x128xf32>
    %2 = tpu.matmul %0, %1, %cst {dimension_numbers = #tpu.dot_dimension_numbers<[1], [0], [0], [1], [0, 0, 1, 1], [], []>} : vector<16x784xbf16>, vector<784x128xbf16>, vector<16x128xf32> -> vector<16x128xf32>
    %c0_3 = arith.constant 0 : index
    %c0_4 = arith.constant 0 : index
    %3 = vector.load %arg3[%c0_3, %c0_4] : memref<1x128xf32, #tpu.memory_space<vmem>>, vector<1x128xf32>
    %4 = vector.broadcast %3 : vector<1x128xf32> to vector<16x128xf32>
    %5 = arith.addf %2, %4 : vector<16x128xf32>
    %cst_5 = arith.constant 0.000000e+00 : f32
    %6 = vector.broadcast %cst_5 : f32 to vector<16x128xf32>
    %7 = arith.maximumf %5, %6 : vector<16x128xf32>
    %8 = arith.truncf %7 : vector<16x128xf32> to vector<16x128xbf16>
    %c0_6 = arith.constant 0 : index
    %c0_7 = arith.constant 0 : index
    %9 = vector.load %arg4[%c0_6, %c0_7] : memref<128x10xbf16, #tpu.memory_space<vmem>>, vector<128x10xbf16>
    %cst_8 = arith.constant dense<0.000000e+00> : vector<16x10xf32>
    %10 = tpu.matmul %8, %9, %cst_8 {dimension_numbers = #tpu.dot_dimension_numbers<[1], [0], [0], [1], [0, 0, 1, 1], [], []>} : vector<16x128xbf16>, vector<128x10xbf16>, vector<16x10xf32> -> vector<16x10xf32>
    %c0_9 = arith.constant 0 : index
    %c0_10 = arith.constant 0 : index
    %11 = vector.load %arg5[%c0_9, %c0_10] : memref<1x10xf32, #tpu.memory_space<vmem>>, vector<1x10xf32>
    %12 = vector.broadcast %11 : vector<1x10xf32> to vector<16x10xf32>
    %13 = arith.addf %10, %12 : vector<16x10xf32>
    %cst_11 = arith.constant dense<0xFF800000> : vector<16xf32>
    %14 = vector.multi_reduction <maximumf>, %13, %cst_11 [1] : vector<16x10xf32> to vector<16xf32>
    %15 = vector.shape_cast %14 : vector<16xf32> to vector<16x1xf32>
    %16 = vector.broadcast %15 : vector<16x1xf32> to vector<16x10xf32>
    %17 = arith.subf %13, %16 : vector<16x10xf32>
    %18 = math.exp %17 : vector<16x10xf32>
    %cst_12 = arith.constant dense<0.000000e+00> : vector<16xf32>
    %19 = vector.multi_reduction <add>, %18, %cst_12 [1] : vector<16x10xf32> to vector<16xf32>
    %20 = vector.shape_cast %19 : vector<16xf32> to vector<16x1xf32>
    %21 = math.log %20 : vector<16x1xf32>
    %22 = vector.broadcast %21 : vector<16x1xf32> to vector<16x10xf32>
    %23 = arith.subf %17, %22 : vector<16x10xf32>
    %c0_13 = arith.constant 0 : index
    %c0_14 = arith.constant 0 : index
    %24 = vector.load %arg6[%c0_13, %c0_14] : memref<16x10xf32, #tpu.memory_space<vmem>>, vector<16x10xf32>
    tpu.vector_store %arg6[%c0_13, %c0_14], %23 {strides = array<i32>} : memref<16x10xf32, #tpu.memory_space<vmem>>, vector<16x10xf32>,
    return
  }
  func.func @transform_0(%arg0: i32) -> (i32, i32) {
    %c0_i32 = arith.constant 0 : i32
    %c0_i32_0 = arith.constant 0 : i32
    return %arg0, %c0_i32 : i32, i32
  }
  func.func @transform_1(%arg0: i32) -> (i32, i32) {
    %c0_i32 = arith.constant 0 : i32
    %c0_i32_0 = arith.constant 0 : i32
    %c0_i32_1 = arith.constant 0 : i32
    return %c0_i32, %c0_i32_0 : i32, i32
  }
  func.func @transform_2(%arg0: i32) -> (i32, i32) {
    %c0_i32 = arith.constant 0 : i32
    %c0_i32_0 = arith.constant 0 : i32
    %c0_i32_1 = arith.constant 0 : i32
    return %c0_i32, %c0_i32_0 : i32, i32
  }
  func.func @transform_3(%arg0: i32) -> (i32, i32) {
    %c0_i32 = arith.constant 0 : i32
    %c0_i32_0 = arith.constant 0 : i32
    %c0_i32_1 = arith.constant 0 : i32
    return %c0_i32, %c0_i32_0 : i32, i32
  }
  func.func @transform_4(%arg0: i32) -> (i32, i32) {
    %c0_i32 = arith.constant 0 : i32
    %c0_i32_0 = arith.constant 0 : i32
    %c0_i32_1 = arith.constant 0 : i32
    return %c0_i32, %c0_i32_0 : i32, i32
  }
  func.func @transform_5(%arg0: i32) -> (i32, i32) {
    %c0_i32 = arith.constant 0 : i32
    %c0_i32_0 = arith.constant 0 : i32
    return %arg0, %c0_i32 : i32, i32
  }
}

</mosaic_0001>

<llo_original>
// kernel: net_forward.1
$region0: #{net_forward.1}
  #allocation0 [shape = 'u32[]', space=smem, size = 0x4, offset = 0x4, fixed_abs, tag = 'smem constant byte address 0x4 - core index']
  #allocation1 [shape = 'u32[144,128]{1,0:T(1,128)}', space=vmem, size = 0x12000, scoped, tag = 'internal scratch']
  %s0 = inlined_call_operand.vmem [shape: bf16[2,784], index: 0, kind: input, shape index: {}]
  %s1 = inlined_call_operand.hbm [shape: bf16[784,128], index: 1, kind: input, shape index: {}]
  %s2 = inlined_call_operand.vmem [shape: f32[1,128], index: 2, kind: input, shape index: {}]
  %s3 = inlined_call_operand.vmem [shape: bf16[128,10], index: 3, kind: input, shape index: {}]
  %s4 = inlined_call_operand.vmem [shape: f32[1,10], index: 4, kind: input, shape index: {}]
  %s5 = inlined_call_operand.hbm [shape: f32[2,10], index: 5, kind: output, shape index: {}]
  %s6 = sld [smem:[#allocation0]]
  $region34: #{net_forward.1} parent=0
    _
  %s8 = ssub.s32 1, %s6
  %s9 = scalar_select 0, %s8, %s6
  $region1: #{net_forward.1} parent=0
    #allocation2 [shape = 'u8[200704]{0}', space=vmem, size = 0x31000, scoped, tag = 'input window, operand 1, single buffered']
    #allocation3 [shape = 's32[1]{0}', space=sflag, size = 0x4, scoped, tag = 'scoped memory for net_forward.1']
    #allocation4 [shape = 's32[1]{0}', space=sflag, size = 0x4, scoped, tag = 'scoped memory for net_forward.1']
    #allocation5 [shape = 'u8[8192]{0}', space=vmem, size = 0x2000, scoped, tag = 'output window, operand 0, single buffered']
    %10 = vsyncpa [#allocation3], 0
    %11 = vsyncpa [#allocation4], 0
    // Predicated region
    $region2: #{net_forward.1} parent=1 // pred_check
      _
    $region3: #{net_forward.1} parent=1 // pred_check_branch
      %13 = sbr.rel (0) target = $region5
    $region4: #{net_forward.1} parent=1 // pred_region
      _
    $region5: #{net_forward.1} parent=1 // pred_fallthru
      _
    // Predicated region
    $region6: #{net_forward.1} parent=1 // pred_check
      _
    $region7: #{net_forward.1} parent=1 // pred_check_branch
      %15 = sbr.rel (0) target = $region9
    $region8: #{net_forward.1} parent=1 // pred_region
      %s17 = ssub.s32 6272, 6272
      %18 = vsyncadd [#allocation3], %s17
      %s19 = sshll.u32 [#allocation2], 4
      %s20 = int_to_ptr.vmem [resolvable:$true] %s19
      %25 = dma.hbm_to_vmem [thread:$0]  %s1, 6272, %s20, [#allocation3], 64, 64, 4
    $region9: #{net_forward.1} parent=1 // pred_fallthru
      _
    // Predicated region
    $region10: #{net_forward.1} parent=1 // pred_check
      _
    $region11: #{net_forward.1} parent=1 // pred_check_branch
      %27 = sbr.rel (0) target = $region13
    $region12: #{net_forward.1} parent=1 // pred_region
      _
    $region13: #{net_forward.1} parent=1 // pred_fallthru
      _
    // Predicated region
    $region14: #{net_forward.1} parent=1 // pred_check
      _
    $region15: #{net_forward.1} parent=1 // pred_check_branch
      %29 = sbr.rel (0) target = $region17
    $region16: #{net_forward.1} parent=1 // pred_region
      _
    $region17: #{net_forward.1} parent=1 // pred_fallthru
      _
    // Predicated region
    $region18: #{net_forward.1} parent=1 // pred_check
      _
    $region19: #{net_forward.1} parent=1 // pred_check_branch
      %31 = sbr.rel (0) target = $region21
    $region20: #{net_forward.1} parent=1 // pred_region
      _
    $region21: #{net_forward.1} parent=1 // pred_fallthru
      _
    // Predicated region
    $region22: #{net_forward.1} parent=1 // pred_check
      _
    $region23: #{net_forward.1} parent=1 // pred_check_branch
      %33 = sbr.rel (0) target = $region25
    $region24: #{net_forward.1} parent=1 // pred_region
      %34 = dma.done [#allocation3], 6272
    $region25: #{net_forward.1} parent=1 // pred_fallthru
      _
    %v36 = vld [vmem:[%s0] sm:$0x7f]
    %v37 = vld [vmem:[%s0 + $0x7] sm:$0x7f]
    %v38 = vld [vmem:[%s0 + $0xe] sm:$0x7f]
    %v39 = vld [vmem:[%s0 + $0x15] sm:$0x7f]
    %v40 = vld [vmem:[%s0 + $0x1c] sm:$0x7f]
    %v41 = vld [vmem:[%s0 + $0x23] sm:$0x7f]
    %v42 = vld [vmem:[%s0 + $0x2a] sm:$0x7f]
    %v43 = vld [vmem:[%s0 + $0x31] sm:$0x7f]
    %v44 = vld [vmem:[#allocation2] sm:$0xf]
    %v45 = vld [vmem:[#allocation2 + $0x4] sm:$0xf]
    %v46 = vld [vmem:[#allocation2 + $0x8] sm:$0xf]
    %v47 = vld [vmem:[#allocation2 + $0xc] sm:$0xf]
    %v48 = vld [vmem:[#allocation2 + $0x10] sm:$0xf]
    %v49 = vld [vmem:[#allocation2 + $0x14] sm:$0xf]
    %v50 = vld [vmem:[#allocation2 + $0x18] sm:$0xf]
    %v51 = vld [vmem:[#allocation2 + $0x1c] sm:$0xf]
    %v52 = vld [vmem:[#allocation2 + $0x20] sm:$0xf]
    %v53 = vld [vmem:[#allocation2 + $0x24] sm:$0xf]
    %v54 = vld [vmem:[#allocation2 + $0x28] sm:$0xf]
    %v55 = vld [vmem:[#allocation2 + $0x2c] sm:$0xf]
    %v56 = vld [vmem:[#allocation2 + $0x30] sm:$0xf]
    %v57 = vld [vmem:[#allocation2 + $0x34] sm:$0xf]
    %v58 = vld [vmem:[#allocation2 + $0x38] sm:$0xf]
    %v59 = vld [vmem:[#allocation2 + $0x3c] sm:$0xf]
    %v60 = vld [vmem:[#allocation2 + $0x40] sm:$0xf]
    %v61 = vld [vmem:[#allocation2 + $0x44] sm:$0xf]
    %v62 = vld [vmem:[#allocation2 + $0x48] sm:$0xf]
    %v63 = vld [vmem:[#allocation2 + $0x4c] sm:$0xf]
    %v64 = vld [vmem:[#allocation2 + $0x50] sm:$0xf]
    %v65 = vld [vmem:[#allocation2 + $0x54] sm:$0xf]
    %v66 = vld [vmem:[#allocation2 + $0x58] sm:$0xf]
    %v67 = vld [vmem:[#allocation2 + $0x5c] sm:$0xf]
    %v68 = vld [vmem:[#allocation2 + $0x60] sm:$0xf]
    %v69 = vld [vmem:[#allocation2 + $0x64] sm:$0xf]
    %v70 = vld [vmem:[#allocation2 + $0x68] sm:$0xf]
    %v71 = vld [vmem:[#allocation2 + $0x6c] sm:$0xf]
    %v72 = vld [vmem:[#allocation2 + $0x70] sm:$0xf]
    %v73 = vld [vmem:[#allocation2 + $0x74] sm:$0xf]
    %v74 = vld [vmem:[#allocation2 + $0x78] sm:$0xf]
    %v75 = vld [vmem:[#allocation2 + $0x7c] sm:$0xf]
    %v76 = vld [vmem:[#allocation2 + $0x80] sm:$0xf]
    %v77 = vld [vmem:[#allocation2 + $0x84] sm:$0xf]
    %v78 = vld [vmem:[#allocation2 + $0x88] sm:$0xf]
    %v79 = vld [vmem:[#allocation2 + $0x8c] sm:$0xf]
    %v80 = vld [vmem:[#allocation2 + $0x90] sm:$0xf]
    %v81 = vld [vmem:[#allocation2 + $0x94] sm:$0xf]
    %v82 = vld [vmem:[#allocation2 + $0x98] sm:$0xf]
    %v83 = vld [vmem:[#allocation2 + $0x9c] sm:$0xf]
    %v84 = vld [vmem:[#allocation2 + $0xa0] sm:$0xf]
    %v85 = vld [vmem:[#allocation2 + $0xa4] sm:$0xf]
    %v86 = vld [vmem:[#allocation2 + $0xa8] sm:$0xf]
    %v87 = vld [vmem:[#allocation2 + $0xac] sm:$0xf]
    %v88 = vld [vmem:[#allocation2 + $0xb0] sm:$0xf]
    %v89 = vld [vmem:[#allocation2 + $0xb4] sm:$0xf]
    %v90 = vld [vmem:[#allocation2 + $0xb8] sm:$0xf]
    %v91 = vld [vmem:[#allocation2 + $0xbc] sm:$0xf]
    %v92 = vld [vmem:[#allocation2 + $0xc0] sm:$0xf]
    %v93 = vld [vmem:[#allocation2 + $0xc4] sm:$0xf]
    %v94 = vld [vmem:[#allocation2 + $0xc8] sm:$0xf]
    %v95 = vld [vmem:[#allocation2 + $0xcc] sm:$0xf]
    %v96 = vld [vmem:[#allocation2 + $0xd0] sm:$0xf]
    %v97 = vld [vmem:[#allocation2 + $0xd4] sm:$0xf]
    %v98 = vld [vmem:[#allocation2 + $0xd8] sm:$0xf]
    %v99 = vld [vmem:[#allocation2 + $0xdc] sm:$0xf]
    %v100 = vld [vmem:[#allocation2 + $0xe0] sm:$0xf]
    %v101 = vld [vmem:[#allocation2 + $0xe4] sm:$0xf]
    %v102 = vld [vmem:[#allocation2 + $0xe8] sm:$0xf]
    %v103 = vld [vmem:[#allocation2 + $0xec] sm:$0xf]
    %v104 = vld [vmem:[#allocation2 + $0xf0] sm:$0xf]
    %v105 = vld [vmem:[#allocation2 + $0xf4] sm:$0xf]
    %v106 = vld [vmem:[#allocation2 + $0xf8] sm:$0xf]
    %v107 = vld [vmem:[#allocation2 + $0xfc] sm:$0xf]
    %v108 = vld [vmem:[#allocation2 + $0x100] sm:$0xf]
    %v109 = vld [vmem:[#allocation2 + $0x104] sm:$0xf]
    %v110 = vld [vmem:[#allocation2 + $0x108] sm:$0xf]
    %v111 = vld [vmem:[#allocation2 + $0x10c] sm:$0xf]
    %v112 = vld [vmem:[#allocation2 + $0x110] sm:$0xf]
    %v113 = vld [vmem:[#allocation2 + $0x114] sm:$0xf]
    %v114 = vld [vmem:[#allocation2 + $0x118] sm:$0xf]
    %v115 = vld [vmem:[#allocation2 + $0x11c] sm:$0xf]
    %v116 = vld [vmem:[#allocation2 + $0x120] sm:$0xf]
    %v117 = vld [vmem:[#allocation2 + $0x124] sm:$0xf]
    %v118 = vld [vmem:[#allocation2 + $0x128] sm:$0xf]
    %v119 = vld [vmem:[#allocation2 + $0x12c] sm:$0xf]
    %v120 = vld [vmem:[#allocation2 + $0x130] sm:$0xf]
    %v121 = vld [vmem:[#allocation2 + $0x134] sm:$0xf]
    %v122 = vld [vmem:[#allocation2 + $0x138] sm:$0xf]
    %v123 = vld [vmem:[#allocation2 + $0x13c] sm:$0xf]
    %v124 = vld [vmem:[#allocation2 + $0x140] sm:$0xf]
    %v125 = vld [vmem:[#allocation2 + $0x144] sm:$0xf]
    %v126 = vld [vmem:[#allocation2 + $0x148] sm:$0xf]
    %v127 = vld [vmem:[#allocation2 + $0x14c] sm:$0xf]
    %v128 = vld [vmem:[#allocation2 + $0x150] sm:$0xf]
    %v129 = vld [vmem:[#allocation2 + $0x154] sm:$0xf]
    %v130 = vld [vmem:[#allocation2 + $0x158] sm:$0xf]
    %v131 = vld [vmem:[#allocation2 + $0x15c] sm:$0xf]
    %v132 = vld [vmem:[#allocation2 + $0x160] sm:$0xf]
    %v133 = vld [vmem:[#allocation2 + $0x164] sm:$0xf]
    %v134 = vld [vmem:[#allocation2 + $0x168] sm:$0xf]
    %v135 = vld [vmem:[#allocation2 + $0x16c] sm:$0xf]
    %v136 = vld [vmem:[#allocation2 + $0x170] sm:$0xf]
    %v137 = vld [vmem:[#allocation2 + $0x174] sm:$0xf]
    %v138 = vld [vmem:[#allocation2 + $0x178] sm:$0xf]
    %v139 = vld [vmem:[#allocation2 + $0x17c] sm:$0xf]
    %v140 = vld [vmem:[#allocation2 + $0x180] sm:$0xf]
    %v141 = vld [vmem:[#allocation2 + $0x184] sm:$0xf]
    %v142 = vld [vmem:[%s2] sm:$0x1]
    %v144 = vlaneseq
    %v145 = vshrl.u32 %v144, 7
    %v146 = vsub.s32 0, %v145
    %v147 = vrot.slane %v142, %v146
    %v157 = vcombine.low %v36, %v37
    %v158 = vcombine.high %v36, %v37
    %v159 = vcombine.low %v38, %v39
    %v160 = vcombine.high %v38, %v39
    %v161 = vcombine.low %v40, %v41
    %v162 = vcombine.high %v40, %v41
    %v163 = vcombine.low %v42, %v43
    %v164 = vcombine.high %v42, %v43
    %v166 = vunpack.c.l.s4 1966171168
    %v167 = vunpack.c.0.s8 %v166
    %v168 = vlaneseq
    %v169 = vshrl.u32 %v168, 7
    %v170 = vsub.s32 %v167, %v169
    %v171 = vrot.slane %v157, %v170
    %v173 = vunpack.c.l.s4 1966171168
    %v174 = vunpack.c.0.s8 %v173
    %v175 = vlaneseq
    %v176 = vshrl.u32 %v175, 7
    %v177 = vsub.s32 %v174, %v176
    %v178 = vrot.slane %v158, %v177
    %v180 = vunpack.c.l.s4 1966171168
    %v181 = vunpack.c.0.s8 %v180
    %v182 = vlaneseq
    %v183 = vshrl.u32 %v182, 7
    %v184 = vsub.s32 %v181, %v183
    %v185 = vrot.slane %v159, %v184
    %v187 = vunpack.c.l.s4 1966171168
    %v188 = vunpack.c.0.s8 %v187
    %v189 = vlaneseq
    %v190 = vshrl.u32 %v189, 7
    %v191 = vsub.s32 %v188, %v190
    %v192 = vrot.slane %v160, %v191
    %v194 = vunpack.c.l.s4 1966171168
    %v195 = vunpack.c.0.s8 %v194
    %v196 = vlaneseq
    %v197 = vshrl.u32 %v196, 7
    %v198 = vsub.s32 %v195, %v197
    %v199 = vrot.slane %v161, %v198
    %v201 = vunpack.c.l.s4 1966171168
    %v202 = vunpack.c.0.s8 %v201
    %v203 = vlaneseq
    %v204 = vshrl.u32 %v203, 7
    %v205 = vsub.s32 %v202, %v204
    %v206 = vrot.slane %v162, %v205
    %v208 = vunpack.c.l.s4 1966171168
    %v209 = vunpack.c.0.s8 %v208
    %v210 = vlaneseq
    %v211 = vshrl.u32 %v210, 7
    %v212 = vsub.s32 %v209, %v211
    %v213 = vrot.slane %v163, %v212
    %v215 = vunpack.c.l.s4 1966171168
    %v216 = vunpack.c.0.s8 %v215
    %v217 = vlaneseq
    %v218 = vshrl.u32 %v217, 7
    %v219 = vsub.s32 %v216, %v218
    %v220 = vrot.slane %v164, %v219
    %v221 = vcombine.low %v171, %v185
    %v222 = vcombine.high %v171, %v185
    %v223 = vcombine.low %v178, %v192
    %v224 = vcombine.high %v178, %v192
    %v225 = vcombine.low %v199, %v213
    %v226 = vcombine.high %v199, %v213
    %v227 = vcombine.low %v206, %v220
    %v228 = vcombine.high %v206, %v220
    %v230 = vunpack.c.l.s4 1966171168
    %v231 = vunpack.c.0.s8 %v230
    %v232 = vlaneseq
    %v233 = vshrl.u32 %v232, 7
    %v234 = vsub.s32 %v231, %v233
    %v235 = vrot.slane %v221, %v234
    %v237 = vunpack.c.l.s4 1966171168
    %v238 = vunpack.c.0.s8 %v237
    %v239 = vlaneseq
    %v240 = vshrl.u32 %v239, 7
    %v241 = vsub.s32 %v238, %v240
    %v242 = vrot.slane %v223, %v241
    %v244 = vunpack.c.l.s4 1966171168
    %v245 = vunpack.c.0.s8 %v244
    %v246 = vlaneseq
    %v247 = vshrl.u32 %v246, 7
    %v248 = vsub.s32 %v245, %v247
    %v249 = vrot.slane %v222, %v248
    %v251 = vunpack.c.l.s4 1966171168
    %v252 = vunpack.c.0.s8 %v251
    %v253 = vlaneseq
    %v254 = vshrl.u32 %v253, 7
    %v255 = vsub.s32 %v252, %v254
    %v256 = vrot.slane %v224, %v255
    %v258 = vunpack.c.l.s4 1966171168
    %v259 = vunpack.c.0.s8 %v258
    %v260 = vlaneseq
    %v261 = vshrl.u32 %v260, 7
    %v262 = vsub.s32 %v259, %v261
    %v263 = vrot.slane %v225, %v262
    %v265 = vunpack.c.l.s4 1966171168
    %v266 = vunpack.c.0.s8 %v265
    %v267 = vlaneseq
    %v268 = vshrl.u32 %v267, 7
    %v269 = vsub.s32 %v266, %v268
    %v270 = vrot.slane %v227, %v269
    %v272 = vunpack.c.l.s4 1966171168
    %v273 = vunpack.c.0.s8 %v272
    %v274 = vlaneseq
    %v275 = vshrl.u32 %v274, 7
    %v276 = vsub.s32 %v273, %v275
    %v277 = vrot.slane %v226, %v276
    %v279 = vunpack.c.l.s4 1966171168
    %v280 = vunpack.c.0.s8 %v279
    %v281 = vlaneseq
    %v282 = vshrl.u32 %v281, 7
    %v283 = vsub.s32 %v280, %v282
    %v284 = vrot.slane %v228, %v283
    %v285 = vcombine.low %v235, %v263
    %v286 = vcombine.high %v235, %v263
    %v287 = vcombine.low %v242, %v270
    %v288 = vcombine.high %v242, %v270
    %v289 = vcombine.low %v249, %v277
    %v290 = vcombine.high %v249, %v277
    %v291 = vcombine.low %v256, %v284
    %v396 = vunpack.c.l.b16 %v44
    %v397 = vunpack.c.l.b16 %v45
    %v398 = vunpack.c.l.b16 %v46
    %v399 = vunpack.c.l.b16 %v47
    %v400 = vunpack.c.l.b16 %v48
    %v401 = vunpack.c.l.b16 %v49
    %v402 = vunpack.c.l.b16 %v50
    %v403 = vunpack.c.l.b16 %v51
    %v404 = vunpack.c.l.b16 %v52
    %v405 = vunpack.c.l.b16 %v53
    %v406 = vunpack.c.l.b16 %v54
    %v407 = vunpack.c.l.b16 %v55
    %v408 = vunpack.c.l.b16 %v56
    %v409 = vunpack.c.l.b16 %v57
    %v410 = vunpack.c.l.b16 %v58
    %v411 = vunpack.c.l.b16 %v59
    %v412 = vunpack.c.l.b16 %v60
    %v413 = vunpack.c.l.b16 %v61
    %v414 = vunpack.c.l.b16 %v62
    %v415 = vunpack.c.l.b16 %v63
    %v416 = vunpack.c.l.b16 %v64
    %v417 = vunpack.c.l.b16 %v65
    %v418 = vunpack.c.l.b16 %v66
    %v419 = vunpack.c.l.b16 %v67
    %v420 = vunpack.c.l.b16 %v68
    %v421 = vunpack.c.l.b16 %v69
    %v422 = vunpack.c.l.b16 %v70
    %v423 = vunpack.c.l.b16 %v71
    %v424 = vunpack.c.l.b16 %v72
    %v425 = vunpack.c.l.b16 %v73
    %v426 = vunpack.c.l.b16 %v74
    %v427 = vunpack.c.l.b16 %v75
    %v428 = vunpack.c.l.b16 %v76
    %v429 = vunpack.c.l.b16 %v77
    %v430 = vunpack.c.l.b16 %v78
    %v431 = vunpack.c.l.b16 %v79
    %v432 = vunpack.c.l.b16 %v80
    %v433 = vunpack.c.l.b16 %v81
    %v434 = vunpack.c.l.b16 %v82
    %v435 = vunpack.c.l.b16 %v83
    %v436 = vunpack.c.l.b16 %v84
    %v437 = vunpack.c.l.b16 %v85
    %v438 = vunpack.c.l.b16 %v86
    %v439 = vunpack.c.l.b16 %v87
    %v440 = vunpack.c.l.b16 %v88
    %v441 = vunpack.c.l.b16 %v89
    %v442 = vunpack.c.l.b16 %v90
    %v443 = vunpack.c.l.b16 %v91
    %v444 = vunpack.c.l.b16 %v92
    %v445 = vunpack.c.l.b16 %v93
    %v446 = vunpack.c.l.b16 %v94
    %v447 = vunpack.c.l.b16 %v95
    %v448 = vunpack.c.l.b16 %v96
    %v449 = vunpack.c.l.b16 %v97
    %v450 = vunpack.c.l.b16 %v98
    %v451 = vunpack.c.l.b16 %v99
    %v452 = vunpack.c.l.b16 %v100
    %v453 = vunpack.c.l.b16 %v101
    %v454 = vunpack.c.l.b16 %v102
    %v455 = vunpack.c.l.b16 %v103
    %v456 = vunpack.c.l.b16 %v104
    %v457 = vunpack.c.l.b16 %v105
    %v458 = vunpack.c.l.b16 %v106
    %v459 = vunpack.c.l.b16 %v107
    %v460 = vunpack.c.l.b16 %v108
    %v461 = vunpack.c.l.b16 %v109
    %v462 = vunpack.c.l.b16 %v110
    %v463 = vunpack.c.l.b16 %v111
    %v464 = vunpack.c.l.b16 %v112
    %v465 = vunpack.c.l.b16 %v113
    %v466 = vunpack.c.l.b16 %v114
    %v467 = vunpack.c.l.b16 %v115
    %v468 = vunpack.c.l.b16 %v116
    %v469 = vunpack.c.l.b16 %v117
    %v470 = vunpack.c.l.b16 %v118
    %v471 = vunpack.c.l.b16 %v119
    %v472 = vunpack.c.l.b16 %v120
    %v473 = vunpack.c.l.b16 %v121
    %v474 = vunpack.c.l.b16 %v122
    %v475 = vunpack.c.l.b16 %v123
    %v476 = vunpack.c.l.b16 %v124
    %v477 = vunpack.c.l.b16 %v125
    %v478 = vunpack.c.l.b16 %v126
    %v479 = vunpack.c.l.b16 %v127
    %v480 = vunpack.c.l.b16 %v128
    %v481 = vunpack.c.l.b16 %v129
    %v482 = vunpack.c.l.b16 %v130
    %v483 = vunpack.c.l.b16 %v131
    %v484 = vunpack.c.l.b16 %v132
    %v485 = vunpack.c.l.b16 %v133
    %v486 = vunpack.c.l.b16 %v134
    %v487 = vunpack.c.l.b16 %v135
    %v488 = vunpack.c.l.b16 %v136
    %v489 = vunpack.c.l.b16 %v137
    %v490 = vunpack.c.l.b16 %v138
    %v491 = vunpack.c.l.b16 %v139
    %v492 = vunpack.c.l.b16 %v140
    %v493 = vunpack.c.l.b16 %v141
    %v494 = vpack.c.b16 %v397, %v396
    %v495 = vpack.c.b16 %v399, %v398
    %v496 = vpack.c.b16 %v401, %v400
    %v497 = vpack.c.b16 %v403, %v402
    %v498 = vpack.c.b16 %v405, %v404
    %v499 = vpack.c.b16 %v407, %v406
    %v500 = vpack.c.b16 %v409, %v408
    %v501 = vpack.c.b16 %v411, %v410
    %v502 = vpack.c.b16 %v413, %v412
    %v503 = vpack.c.b16 %v415, %v414
    %v504 = vpack.c.b16 %v417, %v416
    %v505 = vpack.c.b16 %v419, %v418
    %v506 = vpack.c.b16 %v421, %v420
    %v507 = vpack.c.b16 %v423, %v422
    %v508 = vpack.c.b16 %v425, %v424
    %v509 = vpack.c.b16 %v427, %v426
    %v510 = vpack.c.b16 %v429, %v428
    %v511 = vpack.c.b16 %v431, %v430
    %v512 = vpack.c.b16 %v433, %v432
    %v513 = vpack.c.b16 %v435, %v434
    %v514 = vpack.c.b16 %v437, %v436
    %v515 = vpack.c.b16 %v439, %v438
    %v516 = vpack.c.b16 %v441, %v440
    %v517 = vpack.c.b16 %v443, %v442
    %v518 = vpack.c.b16 %v445, %v444
    %v519 = vpack.c.b16 %v447, %v446
    %v520 = vpack.c.b16 %v449, %v448
    %v521 = vpack.c.b16 %v451, %v450
    %v522 = vpack.c.b16 %v453, %v452
    %v523 = vpack.c.b16 %v455, %v454
    %v524 = vpack.c.b16 %v457, %v456
    %v525 = vpack.c.b16 %v459, %v458
    %v526 = vpack.c.b16 %v461, %v460
    %v527 = vpack.c.b16 %v463, %v462
    %v528 = vpack.c.b16 %v465, %v464
    %v529 = vpack.c.b16 %v467, %v466
    %v530 = vpack.c.b16 %v469, %v468
    %v531 = vpack.c.b16 %v471, %v470
    %v532 = vpack.c.b16 %v473, %v472
    %v533 = vpack.c.b16 %v475, %v474
    %v534 = vpack.c.b16 %v477, %v476
    %v535 = vpack.c.b16 %v479, %v478
    %v536 = vpack.c.b16 %v481, %v480
    %v537 = vpack.c.b16 %v483, %v482
    %v538 = vpack.c.b16 %v485, %v484
    %v539 = vpack.c.b16 %v487, %v486
    %v540 = vpack.c.b16 %v489, %v488
    %v541 = vpack.c.b16 %v491, %v490
    %v542 = vpack.c.b16 %v493, %v492
    %vm592 = vcmask 130048
    %v594 = vsel %vm592, %v288, 0
    %596 = vmatprep.subr.bf16.mxu0 0
    %597 = vmatpush1.bf16.msra.mxu0 %v494
    %598 = vmatprep.subr.bf16.mxu0 0
    %599 = vmatpush1.bf16.msra.mxu0 %v495
    %600 = vmatprep.subr.bf16.mxu0 0
    %601 = vmatpush1.bf16.msra.mxu0 %v496
    %602 = vmatprep.subr.bf16.mxu0 0
    %603 = vmatpush1.bf16.msra.mxu0 %v497
    %604 = vmatprep.subr.bf16.mxu0 0
    %605 = vmatpush1.bf16.msra.mxu0 %v498
    %606 = vmatprep.subr.bf16.mxu0 0
    %607 = vmatpush1.bf16.msra.mxu0 %v499
    %608 = vmatprep.subr.bf16.mxu0 0
    %609 = vmatpush1.bf16.msra.mxu0 %v500
    %610 = vmatprep.subr.bf16.mxu0 0
    %611 = vmatpush1.bf16.msra.mxu0 %v501
    %612 = vmatprep.subr.bf16.mxu0 0
    %613 = vmatpush1.bf16.msra.mxu0 %v502
    %614 = vmatprep.subr.bf16.mxu0 0
    %615 = vmatpush1.bf16.msra.mxu0 %v503
    %616 = vmatprep.subr.bf16.mxu0 0
    %617 = vmatpush1.bf16.msra.mxu0 %v504
    %618 = vmatprep.subr.bf16.mxu0 0
    %619 = vmatpush1.bf16.msra.mxu0 %v505
    %620 = vmatprep.subr.bf16.mxu0 0
    %621 = vmatpush1.bf16.msra.mxu0 %v506
    %622 = vmatprep.subr.bf16.mxu0 0
    %623 = vmatpush1.bf16.msra.mxu0 %v507
    %624 = vmatprep.subr.bf16.mxu0 0
    %625 = vmatpush1.bf16.msra.mxu0 %v508
    %626 = vmatprep.subr.bf16.mxu0 0
    %627 = vmatpush1.bf16.msra.mxu0 %v509
    %628 = vmatprep.mubr.bf16.mxu0 %v289
    %629 = vmatmul.mubr.bf16.gmra.mrb[0].mxu0 %v285
    %v630 = vpop.f32.mrb[0].mxu0
    %v631 = vadd.f32 %v147, %v630
    %v632 = vpop.f32.mrb[0].mxu0
    %v633 = vpop.f32.mrb[0].mxu0
    %v634 = vadd.f32 %v147, %v633
    %v635 = vpop.f32.mrb[0].mxu0
    %636 = vdwg.mxu0
    %637 = vmatprep.subr.bf16.mxu0 0
    %638 = vmatpush1.bf16.msra.mxu0 %v510
    %639 = vmatprep.subr.bf16.mxu0 0
    %640 = vmatpush1.bf16.msra.mxu0 %v511
    %641 = vmatprep.subr.bf16.mxu0 0
    %642 = vmatpush1.bf16.msra.mxu0 %v512
    %643 = vmatprep.subr.bf16.mxu0 0
    %644 = vmatpush1.bf16.msra.mxu0 %v513
    %645 = vmatprep.subr.bf16.mxu0 0
    %646 = vmatpush1.bf16.msra.mxu0 %v514
    %647 = vmatprep.subr.bf16.mxu0 0
    %648 = vmatpush1.bf16.msra.mxu0 %v515
    %649 = vmatprep.subr.bf16.mxu0 0
    %650 = vmatpush1.bf16.msra.mxu0 %v516
    %651 = vmatprep.subr.bf16.mxu0 0
    %652 = vmatpush1.bf16.msra.mxu0 %v517
    %653 = vmatprep.subr.bf16.mxu0 0
    %654 = vmatpush1.bf16.msra.mxu0 %v518
    %655 = vmatprep.subr.bf16.mxu0 0
    %656 = vmatpush1.bf16.msra.mxu0 %v519
    %657 = vmatprep.subr.bf16.mxu0 0
    %658 = vmatpush1.bf16.msra.mxu0 %v520
    %659 = vmatprep.subr.bf16.mxu0 0
    %660 = vmatpush1.bf16.msra.mxu0 %v521
    %661 = vmatprep.subr.bf16.mxu0 0
    %662 = vmatpush1.bf16.msra.mxu0 %v522
    %663 = vmatprep.subr.bf16.mxu0 0
    %664 = vmatpush1.bf16.msra.mxu0 %v523
    %665 = vmatprep.subr.bf16.mxu0 0
    %666 = vmatpush1.bf16.msra.mxu0 %v524
    %667 = vmatprep.subr.bf16.mxu0 0
    %668 = vmatpush1.bf16.msra.mxu0 %v525
    %669 = vmatprep.mubr.bf16.mxu0 %v290
    %670 = vmatmul.mubr.bf16.gmra.mrb[0].mxu0 %v286
    %v671 = vpop.f32.mrb[0].mxu0
    %v672 = vadd.f32 %v631, %v671
    %v673 = vpop.f32.mrb[0].mxu0
    %v674 = vpop.f32.mrb[0].mxu0
    %v675 = vadd.f32 %v634, %v674
    %v676 = vpop.f32.mrb[0].mxu0
    %677 = vdwg.mxu0
    %678 = vmatprep.subr.bf16.mxu0 0
    %679 = vmatpush1.bf16.msra.mxu0 %v526
    %680 = vmatprep.subr.bf16.mxu0 0
    %681 = vmatpush1.bf16.msra.mxu0 %v527
    %682 = vmatprep.subr.bf16.mxu0 0
    %683 = vmatpush1.bf16.msra.mxu0 %v528
    %684 = vmatprep.subr.bf16.mxu0 0
    %685 = vmatpush1.bf16.msra.mxu0 %v529
    %686 = vmatprep.subr.bf16.mxu0 0
    %687 = vmatpush1.bf16.msra.mxu0 %v530
    %688 = vmatprep.subr.bf16.mxu0 0
    %689 = vmatpush1.bf16.msra.mxu0 %v531
    %690 = vmatprep.subr.bf16.mxu0 0
    %691 = vmatpush1.bf16.msra.mxu0 %v532
    %692 = vmatprep.subr.bf16.mxu0 0
    %693 = vmatpush1.bf16.msra.mxu0 %v533
    %694 = vmatprep.subr.bf16.mxu0 0
    %695 = vmatpush1.bf16.msra.mxu0 %v534
    %696 = vmatprep.subr.bf16.mxu0 0
    %697 = vmatpush1.bf16.msra.mxu0 %v535
    %698 = vmatprep.subr.bf16.mxu0 0
    %699 = vmatpush1.bf16.msra.mxu0 %v536
    %700 = vmatprep.subr.bf16.mxu0 0
    %701 = vmatpush1.bf16.msra.mxu0 %v537
    %702 = vmatprep.subr.bf16.mxu0 0
    %703 = vmatpush1.bf16.msra.mxu0 %v538
    %704 = vmatprep.subr.bf16.mxu0 0
    %705 = vmatpush1.bf16.msra.mxu0 %v539
    %706 = vmatprep.subr.bf16.mxu0 0
    %707 = vmatpush1.bf16.msra.mxu0 %v540
    %708 = vmatprep.subr.bf16.mxu0 0
    %709 = vmatpush1.bf16.msra.mxu0 %v541
    %710 = vmatprep.mubr.bf16.mxu0 %v291
    %711 = vmatmul.mubr.bf16.gmra.mrb[0].mxu0 %v287
    %v712 = vpop.f32.mrb[0].mxu0
    %v713 = vadd.f32 %v672, %v712
    %v714 = vpop.f32.mrb[0].mxu0
    %v715 = vpop.f32.mrb[0].mxu0
    %v716 = vadd.f32 %v675, %v715
    %v717 = vpop.f32.mrb[0].mxu0
    %718 = vdwg.mxu0
    %719 = vmatprep.subr.bf16.mxu0 0
    %720 = vmatpush1.bf16.msra.mxu0 %v542
    %721 = vmatprep.subr.bf16.mxu0 0
    %722 = vmatpush1.bf16.msra.mxu0 0
    %723 = vmatprep.subr.bf16.mxu0 0
    %724 = vmatpush1.bf16.msra.mxu0 0
    %725 = vmatprep.subr.bf16.mxu0 0
    %726 = vmatpush1.bf16.msra.mxu0 0
    %727 = vmatprep.subr.bf16.mxu0 0
    %728 = vmatpush1.bf16.msra.mxu0 0
    %729 = vmatprep.subr.bf16.mxu0 0
    %730 = vmatpush1.bf16.msra.mxu0 0
    %731 = vmatprep.subr.bf16.mxu0 0
    %732 = vmatpush1.bf16.msra.mxu0 0
    %733 = vmatprep.subr.bf16.mxu0 0
    %734 = vmatpush1.bf16.msra.mxu0 0
    %735 = vmatprep.subr.bf16.mxu0 0
    %736 = vmatpush1.bf16.msra.mxu0 0
    %737 = vmatprep.subr.bf16.mxu0 0
    %738 = vmatpush1.bf16.msra.mxu0 0
    %739 = vmatprep.subr.bf16.mxu0 0
    %740 = vmatpush1.bf16.msra.mxu0 0
    %741 = vmatprep.subr.bf16.mxu0 0
    %742 = vmatpush1.bf16.msra.mxu0 0
    %743 = vmatprep.subr.bf16.mxu0 0
    %744 = vmatpush1.bf16.msra.mxu0 0
    %745 = vmatprep.subr.bf16.mxu0 0
    %746 = vmatpush1.bf16.msra.mxu0 0
    %747 = vmatprep.subr.bf16.mxu0 0
    %748 = vmatpush1.bf16.msra.mxu0 0
    %749 = vmatprep.subr.bf16.mxu0 0
    %750 = vmatpush1.bf16.msra.mxu0 0
    %751 = vmatprep.mubr.bf16.mxu0 0
    %752 = vmatmul.mubr.bf16.gmra.mrb[0].mxu0 %v594
    %v753 = vpop.f32.mrb[0].mxu0
    %v754 = vadd.f32 %v713, %v753
    %v755 = vpop.f32.mrb[0].mxu0
    %v756 = vpop.f32.mrb[0].mxu0
    %v757 = vadd.f32 %v716, %v756
    %v758 = vpop.f32.mrb[0].mxu0
    %759 = vdwg.mxu0
    %v760 = vmax.f32 %v754, 0.0
    %v761 = vmax.f32 %v757, 0.0
    %v762 = vpack.c.bf16 %v761, %v760
    %v763 = vld [vmem:[%s3] sm:$0xf]
    %v764 = vld [vmem:[%s3 + $0x4] sm:$0xf]
    %v765 = vld [vmem:[%s3 + $0x8] sm:$0xf]
    %v766 = vld [vmem:[%s3 + $0xc] sm:$0xf]
    %v767 = vld [vmem:[%s3 + $0x10] sm:$0xf]
    %v768 = vld [vmem:[%s3 + $0x14] sm:$0xf]
    %v769 = vld [vmem:[%s3 + $0x18] sm:$0xf]
    %v770 = vld [vmem:[%s3 + $0x1c] sm:$0xf]
    %v771 = vld [vmem:[%s3 + $0x20] sm:$0xf]
    %v772 = vld [vmem:[%s3 + $0x24] sm:$0xf]
    %v773 = vld [vmem:[%s3 + $0x28] sm:$0xf]
    %v774 = vld [vmem:[%s3 + $0x2c] sm:$0xf]
    %v775 = vld [vmem:[%s3 + $0x30] sm:$0xf]
    %v776 = vld [vmem:[%s3 + $0x34] sm:$0xf]
    %v777 = vld [vmem:[%s3 + $0x38] sm:$0xf]
    %v778 = vld [vmem:[%s3 + $0x3c] sm:$0xf]
    %v779 = vld [vmem:[%s4] sm:$0x1]
    %v781 = vlaneseq
    %v782 = vshrl.u32 %v781, 7
    %v783 = vsub.s32 0, %v782
    %v784 = vrot.slane %v779, %v783
    %v802 = vunpack.c.l.b16 %v763
    %v803 = vunpack.c.l.b16 %v764
    %v804 = vunpack.c.l.b16 %v765
    %v805 = vunpack.c.l.b16 %v766
    %v806 = vunpack.c.l.b16 %v767
    %v807 = vunpack.c.l.b16 %v768
    %v808 = vunpack.c.l.b16 %v769
    %v809 = vunpack.c.l.b16 %v770
    %v810 = vunpack.c.l.b16 %v771
    %v811 = vunpack.c.l.b16 %v772
    %v812 = vunpack.c.l.b16 %v773
    %v813 = vunpack.c.l.b16 %v774
    %v814 = vunpack.c.l.b16 %v775
    %v815 = vunpack.c.l.b16 %v776
    %v816 = vunpack.c.l.b16 %v777
    %v817 = vunpack.c.l.b16 %v778
    %v818 = vpack.c.b16 %v803, %v802
    %v819 = vpack.c.b16 %v805, %v804
    %v820 = vpack.c.b16 %v807, %v806
    %v821 = vpack.c.b16 %v809, %v808
    %v822 = vpack.c.b16 %v811, %v810
    %v823 = vpack.c.b16 %v813, %v812
    %v824 = vpack.c.b16 %v815, %v814
    %v825 = vpack.c.b16 %v817, %v816
    %834 = vmatprep.subr.bf16.mxu0 0
    %835 = vmatpush1.bf16.msra.mxu0 %v818
    %836 = vmatprep.subr.bf16.mxu0 0
    %837 = vmatpush1.bf16.msra.mxu0 %v819
    %838 = vmatprep.subr.bf16.mxu0 0
    %839 = vmatpush1.bf16.msra.mxu0 %v820
    %840 = vmatprep.subr.bf16.mxu0 0
    %841 = vmatpush1.bf16.msra.mxu0 %v821
    %842 = vmatprep.subr.bf16.mxu0 0
    %843 = vmatpush1.bf16.msra.mxu0 %v822
    %844 = vmatprep.subr.bf16.mxu0 0
    %845 = vmatpush1.bf16.msra.mxu0 %v823
    %846 = vmatprep.subr.bf16.mxu0 0
    %847 = vmatpush1.bf16.msra.mxu0 %v824
    %848 = vmatprep.subr.bf16.mxu0 0
    %849 = vmatpush1.bf16.msra.mxu0 %v825
    %850 = vmatprep.subr.bf16.mxu0 0
    %851 = vmatpush1.bf16.msra.mxu0 0
    %852 = vmatprep.subr.bf16.mxu0 0
    %853 = vmatpush1.bf16.msra.mxu0 0
    %854 = vmatprep.subr.bf16.mxu0 0
    %855 = vmatpush1.bf16.msra.mxu0 0
    %856 = vmatprep.subr.bf16.mxu0 0
    %857 = vmatpush1.bf16.msra.mxu0 0
    %858 = vmatprep.subr.bf16.mxu0 0
    %859 = vmatpush1.bf16.msra.mxu0 0
    %860 = vmatprep.subr.bf16.mxu0 0
    %861 = vmatpush1.bf16.msra.mxu0 0
    %862 = vmatprep.subr.bf16.mxu0 0
    %863 = vmatpush1.bf16.msra.mxu0 0
    %864 = vmatprep.subr.bf16.mxu0 0
    %865 = vmatpush1.bf16.msra.mxu0 0
    %866 = vmatprep.mubr.bf16.mxu0 0
    %867 = vmatmul.mubr.bf16.gmra.mrb[0].mxu0 %v762
    %v868 = vpop.f32.mrb[0].mxu0
    %v869 = vadd.f32 %v784, %v868
    %v870 = vpop.f32.mrb[0].mxu0
    %v871 = vpop.f32.mrb[0].mxu0
    %v872 = vadd.f32 %v784, %v871
    %v873 = vpop.f32.mrb[0].mxu0
    %874 = vdwg.mxu0
    %vm875 = vcmask 80896
    %v876 = vsel %vm875, %v869, -inf
    %877 = vmax.xlane.f32.xlu0 %v876
    %v878 = vpop.xlane.xlu0 %877
    %v879 = vsel %vm875, %v872, -inf
    %880 = vmax.xlane.f32.xlu0 %v879
    %v881 = vpop.xlane.xlu0 %880
    %v882 = vsub.f32 %v869, %v878
    %v883 = vsub.f32 %v872, %v881
    %v884 = vmul.f32 %v882, 1.442695
    %v885 = vpow.pop %v884
    %v886 = vmul.f32 %v883, 1.442695
    %v887 = vpow.pop %v886
    %v888 = vsel %vm875, %v885, 0.0
    %889 = vadd.xlane.f32.xlu0 %v888
    %v890 = vpop.xlane.xlu0 %889
    %v891 = vsel %vm875, %v887, 0.0
    %892 = vadd.xlane.f32.xlu0 %v891
    %v893 = vpop.xlane.xlu0 %892
    %v894 = vlog2.pop %v890
    %v895 = vmul.f32 %v894, 0.6931472
    %v896 = vlog2.pop %v893
    %v897 = vmul.f32 %v896, 0.6931472
    %v898 = vsub.f32 %v882, %v895
    %v899 = vsub.f32 %v883, %v897
    %900 = vst.msk [vmem:[#allocation5] sm:$0xff] %vm875, %v898
    %901 = vst.msk [vmem:[#allocation5 + $0x8] sm:$0xff] %vm875, %v899
    // Predicated region
    $region26: #{net_forward.1} parent=1 // pred_check
      _
    $region27: #{net_forward.1} parent=1 // pred_check_branch
      %903 = sbr.rel (0) target = $region29
    $region28: #{net_forward.1} parent=1 // pred_region
      %s905 = ssub.s32 256, 32
      %906 = vsyncadd [#allocation4], %s905
      %s907 = sshll.u32 [#allocation5], 4
      %s908 = int_to_ptr.vmem [resolvable:$true] %s907
      %913 = dma.vmem_to_hbm [thread:$0]  %s908, 32, %s5, [#allocation4], 32, 32, 2
    $region29: #{net_forward.1} parent=1 // pred_fallthru
      _
    // Predicated region
    $region30: #{net_forward.1} parent=1 // pred_check
      _
    $region31: #{net_forward.1} parent=1 // pred_check_branch
      %915 = sbr.rel (0) target = $region33
    $region32: #{net_forward.1} parent=1 // pred_region
      %916 = dma.done [#allocation4], 256
    $region33: #{net_forward.1} parent=1 // pred_fallthru
      _
    %917 = vsyncpa [#allocation3], 1
    %918 = vsyncpa [#allocation4], 1

</llo_original>
